<compile_context>
chip_gen: v7x
topology: tpu7x:2x2x1
jax: 0.10.0
libtpu: 0.0.40
codegen_flags: <defaults>
</compile_context>

<pallas_src>
import functools

import jax
import jax.numpy as jnp
from jax.experimental import pallas as pl
from jax.experimental.pallas import tpu as pltpu


def _round_up(x, m):
    return (x + m - 1) // m * m


def _ce_kernel(inp_ref, tgt_ref, out_ref, *,
               lower_bound, higher_bound, n_rows, tile_rows):
    # inp_ref: (TN, C) input dtype, tgt_ref: (TN, 1) int32,
    # out_ref: (8, 128) f32 per-tile partial-sum block (splatted with the tile's sum).
    i = pl.program_id(0)

    x_in = inp_ref[...]                                          # (TN, C) input dtype
    tgt = tgt_ref[...]                                           # (TN, 1) int32

    # One-hot of the target column (shared by both gathers).
    col = jax.lax.broadcasted_iota(jnp.int32, x_in.shape, 1)     # (TN, C)
    onehot = col == tgt                                          # (TN, C) bool

    # Row max + target-logit gather in the input dtype (exact; bf16 stays bf16 here).
    m = jnp.max(x_in, axis=1, keepdims=True).astype(jnp.float32)             # (TN, 1)
    x_t = jnp.sum(jnp.where(onehot, x_in, jnp.zeros_like(x_in)),
                  axis=1, keepdims=True).astype(jnp.float32)                 # (TN, 1)

    # exp / sum in f32.
    e = jnp.exp(x_in.astype(jnp.float32) - m)                    # (TN, C)
    s = jnp.sum(e, axis=1, keepdims=True)                        # (TN, 1)
    # Gather e_t from the same e that was summed into s, so e_t <= s bit-exactly.
    e_t = jnp.sum(jnp.where(onehot, e, 0.0), axis=1, keepdims=True)          # (TN, 1)

    log_softmax_t = (x_t - m) - jnp.log(s)                       # (TN, 1)

    # Clamps in the scaled domain: softmax_t {>,<} bound  <=>  e_t {>,<} bound * s.
    # (lower_bound override wins, same as the PyTorch module's statement order.)
    reg_t = jnp.where(e_t > higher_bound * s, 0.0, log_softmax_t)
    reg_t = jnp.where(e_t < lower_bound * s, -99999.99999, reg_t)
    neg = -reg_t                                                 # (TN, 1)

    def _write(v):
        psum = jnp.sum(v, axis=0, keepdims=True)                 # (1, 1) f32
        out_ref[...] = jnp.broadcast_to(psum, out_ref.shape)

    if n_rows % tile_rows != 0:
        # Only the last tile can be ragged; only it pays for the row mask.
        last = pl.num_programs(0) - 1

        @pl.when(i != last)
        def _():
            _write(neg)

        @pl.when(i == last)
        def _():
            # Select (NOT multiply-by-mask): padded tail rows may hold NaN/Inf garbage.
            row = jax.lax.broadcasted_iota(jnp.int32, neg.shape, 0) + i * tile_rows
            _write(jnp.where(row < n_rows, neg, jnp.zeros_like(neg)))
    else:
        _write(neg)


def custom_cross_entropy_loss(inp, target, *, lower_bound=0.0, higher_bound=1.0,
                              max_rows_per_tile=None):
    """inp: (N, C) float array, target: (N,) int class indices. Returns scalar f32."""
    N, C = inp.shape
    tgt2d = target.astype(jnp.int32).reshape(N, 1)

    # --- Batch-tile sizing: purely byte-budget driven (no artificial row cap). ---
    # Double-buffered pipeline buffers must fit in ~12 MiB, leaving the rest of the
    # explicit 32 MiB scoped-VMEM limit for compiler temporaries (the (tn, C) exp etc.).
    # VMEM footprints are lane-padded: the (tn, C) input block pads C up to 128 lanes,
    # and the (tn, 1) int32 target block occupies a full (8, 128) tile per 8 rows
    # (512 B / row) -- both are included in the budget.
    itemsize = jnp.dtype(inp.dtype).itemsize
    row_in_bytes = _round_up(C, 128) * itemsize
    row_tgt_bytes = 128 * 4
    buffer_budget = 12 * 1024 * 1024
    tn = buffer_budget // (2 * (row_in_bytes + row_tgt_bytes))   # x2: double buffering
    tn = max(8, (tn // 8) * 8)
    if max_rows_per_tile is not None:
        tn = max(8, min(tn, (max_rows_per_tile // 8) * 8))
    tn = min(tn, _round_up(N, 8))
    num_tiles = (N + tn - 1) // tn

    kernel = functools.partial(
        _ce_kernel,
        lower_bound=float(lower_bound),
        higher_bound=float(higher_bound),
        n_rows=N,
        tile_rows=tn,
    )

    partials = pl.pallas_call(
        kernel,
        out_shape=jax.ShapeDtypeStruct((num_tiles * 8, 128), jnp.float32),
        grid=(num_tiles,),
        in_specs=[
            pl.BlockSpec((tn, C), lambda i: (i, 0)),
            pl.BlockSpec((tn, 1), lambda i: (i, 0)),
        ],
        # Independent, lane-dense (8, 128) partial-sum blocks per tile => the grid axis
        # can be "parallel" (both v7x TensorCores); no resident accumulator / pl.when
        # init-finalize phases needed.
        out_specs=pl.BlockSpec((8, 128), lambda i: (i, 0)),
        compiler_params=pltpu.CompilerParams(
            dimension_semantics=("parallel",),
            vmem_limit_bytes=32 * 1024 * 1024,
        ),
    )(inp, tgt2d)

    # Tiny finalization in XLA: one partial scalar per tile, then the mean.
    return jnp.sum(partials[0::8, 0]) / N


def _reference(inp, target, lower_bound=0.0, higher_bound=1.0):
    x = inp.astype(jnp.float32)
    softmax = jax.nn.softmax(x, axis=1)
    log_softmax = jax.nn.log_softmax(x, axis=1)
    reg = jnp.where(softmax > higher_bound, 0.0, log_softmax)
    reg = jnp.where(softmax < lower_bound, -99999.99999, reg)
    picked = jnp.take_along_axis(reg, target[:, None].astype(jnp.int32), axis=1)[:, 0]
    return -jnp.mean(picked)


if __name__ == "__main__":
    key = jax.random.PRNGKey(0)
    k1, k2, k3, k4, k5, k6 = jax.random.split(key, 6)

    # Case 1: small aligned shapes (batch=8, num_classes=32).
    N1, C1 = 8, 32
    inp1 = jax.random.normal(k1, (N1, C1), dtype=jnp.float32)
    tgt1 = jax.random.randint(k2, (N1,), 0, C1, dtype=jnp.int32)
    loss1 = jax.block_until_ready(custom_cross_entropy_loss(inp1, tgt1))
    ref1 = _reference(inp1, tgt1)
    assert jnp.allclose(loss1, ref1, atol=1e-5, rtol=1e-5), (loss1, ref1)

    # Case 2: ragged batch (N not a multiple of the sublane tile) to exercise masking.
    N2, C2 = 20, 32
    inp2 = jax.random.normal(k3, (N2, C2), dtype=jnp.float32)
    tgt2 = jax.random.randint(k4, (N2,), 0, C2, dtype=jnp.int32)
    loss2 = jax.block_until_ready(custom_cross_entropy_loss(inp2, tgt2))
    ref2 = _reference(inp2, tgt2)
    assert jnp.allclose(loss2, ref2, atol=1e-5, rtol=1e-5), (loss2, ref2)

    # Case 3: force multiple grid tiles (+ ragged last tile) with non-default bounds to
    # exercise the per-tile partial-sum path and both clamps.
    N3, C3 = 28, 32
    inp3 = 3.0 * jax.random.normal(k5, (N3, C3), dtype=jnp.float32)
    tgt3 = jax.random.randint(k6, (N3,), 0, C3, dtype=jnp.int32)
    loss3 = jax.block_until_ready(
        custom_cross_entropy_loss(inp3, tgt3, lower_bound=0.02, higher_bound=0.5,
                                  max_rows_per_tile=8))
    ref3 = _reference(inp3, tgt3, lower_bound=0.02, higher_bound=0.5)
    assert jnp.allclose(loss3, ref3, atol=1e-4, rtol=1e-5), (loss3, ref3)

    print("KERNEL_OK")
</pallas_src>

<mosaic_0001>
module attributes {stable_mosaic.version = 11 : i64} {
  func.func @_ce_kernel(%arg0: i32, %arg1: memref<8x32xf32, #tpu.memory_space<vmem>>, %arg2: memref<8x1xi32, #tpu.memory_space<vmem>>, %arg3: memref<8x128xf32, #tpu.memory_space<vmem>>) attributes {dimension_semantics = [#tpu.dimension_semantics<parallel>], iteration_bounds = array<i64: 1>, scalar_prefetch = 0 : i64, scratch_operands = 0 : i64, tpu.core_type = #tpu.core_type<tc>, window_params = [{transform_indices = @transform_0, window_bounds = array<i64: 8, 32>}, {transform_indices = @transform_1, window_bounds = array<i64: 8, 1>}, {transform_indices = @transform_2, window_bounds = array<i64: 8, 128>}]} {
    %c0 = arith.constant 0 : index
    %c0_0 = arith.constant 0 : index
    %0 = vector.load %arg1[%c0, %c0_0] : memref<8x32xf32, #tpu.memory_space<vmem>>, vector<8x32xf32>
    %c0_1 = arith.constant 0 : index
    %c0_2 = arith.constant 0 : index
    %1 = vector.load %arg2[%c0_1, %c0_2] : memref<8x1xi32, #tpu.memory_space<vmem>>, vector<8x1xi32>
    %2 = tpu.iota {dimensions = array<i32: 1>} : vector<8x32xi32>
    %3 = vector.broadcast %1 : vector<8x1xi32> to vector<8x32xi32>
    %4 = arith.cmpi eq, %2, %3 : vector<8x32xi32>
    %cst = arith.constant dense<0xFF800000> : vector<8xf32>
    %5 = vector.multi_reduction <maximumf>, %0, %cst [1] : vector<8x32xf32> to vector<8xf32>
    %6 = vector.shape_cast %5 : vector<8xf32> to vector<8x1xf32>
    %cst_3 = arith.constant 0.000000e+00 : f32
    %7 = vector.broadcast %cst_3 : f32 to vector<8x32xf32>
    %8 = arith.select %4, %0, %7 : vector<8x32xi1>, vector<8x32xf32>
    %cst_4 = arith.constant dense<0.000000e+00> : vector<8xf32>
    %9 = vector.multi_reduction <add>, %8, %cst_4 [1] : vector<8x32xf32> to vector<8xf32>
    %10 = vector.shape_cast %9 : vector<8xf32> to vector<8x1xf32>
    %11 = vector.broadcast %6 : vector<8x1xf32> to vector<8x32xf32>
    %12 = arith.subf %0, %11 : vector<8x32xf32>
    %13 = math.exp %12 : vector<8x32xf32>
    %cst_5 = arith.constant dense<0.000000e+00> : vector<8xf32>
    %14 = vector.multi_reduction <add>, %13, %cst_5 [1] : vector<8x32xf32> to vector<8xf32>
    %15 = vector.shape_cast %14 : vector<8xf32> to vector<8x1xf32>
    %cst_6 = arith.constant 0.000000e+00 : f32
    %16 = vector.broadcast %cst_6 : f32 to vector<8x32xf32>
    %17 = arith.select %4, %13, %16 : vector<8x32xi1>, vector<8x32xf32>
    %cst_7 = arith.constant dense<0.000000e+00> : vector<8xf32>
    %18 = vector.multi_reduction <add>, %17, %cst_7 [1] : vector<8x32xf32> to vector<8xf32>
    %19 = vector.shape_cast %18 : vector<8xf32> to vector<8x1xf32>
    %20 = arith.subf %10, %6 : vector<8x1xf32>
    %21 = math.log %15 : vector<8x1xf32>
    %22 = arith.subf %20, %21 : vector<8x1xf32>
    %cst_8 = arith.constant 1.000000e+00 : f32
    %23 = vector.broadcast %cst_8 : f32 to vector<8x1xf32>
    %24 = arith.mulf %23, %15 : vector<8x1xf32>
    %25 = arith.cmpf ogt, %19, %24 : vector<8x1xf32>
    %cst_9 = arith.constant 0.000000e+00 : f32
    %26 = vector.broadcast %cst_9 : f32 to vector<8x1xf32>
    %27 = arith.select %25, %26, %22 : vector<8x1xi1>, vector<8x1xf32>
    %cst_10 = arith.constant 0.000000e+00 : f32
    %28 = vector.broadcast %cst_10 : f32 to vector<8x1xf32>
    %29 = arith.mulf %28, %15 : vector<8x1xf32>
    %30 = arith.cmpf olt, %19, %29 : vector<8x1xf32>
    %cst_11 = arith.constant -1.000000e+05 : f32
    %31 = vector.broadcast %cst_11 : f32 to vector<8x1xf32>
    %32 = arith.select %30, %31, %27 : vector<8x1xi1>, vector<8x1xf32>
    %cst_12 = arith.constant 0.000000e+00 : f32
    %33 = vector.broadcast %cst_12 : f32 to vector<8x1xf32>
    %34 = arith.subf %33, %32 : vector<8x1xf32>
    %cst_13 = arith.constant dense<0.000000e+00> : vector<1xf32>
    %35 = vector.multi_reduction <add>, %34, %cst_13 [0] : vector<8x1xf32> to vector<1xf32>
    %36 = vector.shape_cast %35 : vector<1xf32> to vector<1x1xf32>
    %37 = vector.shape_cast %36 : vector<1x1xf32> to vector<1x1xf32>
    %38 = vector.broadcast %37 : vector<1x1xf32> to vector<8x128xf32>
    %c0_14 = arith.constant 0 : index
    %c0_15 = arith.constant 0 : index
    %39 = vector.load %arg3[%c0_14, %c0_15] : memref<8x128xf32, #tpu.memory_space<vmem>>, vector<8x128xf32>
    tpu.vector_store %arg3[%c0_14, %c0_15], %38 {strides = array<i32>} : memref<8x128xf32, #tpu.memory_space<vmem>>, vector<8x128xf32>,
    return
  }
  func.func @transform_0(%arg0: i32) -> (i32, i32) {
    %c0_i32 = arith.constant 0 : i32
    %c0_i32_0 = arith.constant 0 : i32
    return %arg0, %c0_i32 : i32, i32
  }
  func.func @transform_1(%arg0: i32) -> (i32, i32) {
    %c0_i32 = arith.constant 0 : i32
    %c0_i32_0 = arith.constant 0 : i32
    return %arg0, %c0_i32 : i32, i32
  }
  func.func @transform_2(%arg0: i32) -> (i32, i32) {
    %c0_i32 = arith.constant 0 : i32
    %c0_i32_0 = arith.constant 0 : i32
    return %arg0, %c0_i32 : i32, i32
  }
}

</mosaic_0001>

<llo_original>
// kernel: tpu_custom_call.1
$region0: #{tpu_custom_call.1}
  #allocation0 [shape = 'u32[]', space=smem, size = 0x4, offset = 0x4, fixed_abs, tag = 'smem constant byte address 0x4 - core index']
  #allocation1 [shape = 'u32[144,128]{1,0:T(1,128)}', space=vmem, size = 0x12000, scoped, tag = 'internal scratch']
  %s0 = inlined_call_operand.vmem [shape: f32[8,32], index: 0, kind: input, shape index: {}]
  %s1 = inlined_call_operand.vmem [shape: s32[8,1], index: 1, kind: input, shape index: {}]
  %s2 = inlined_call_operand.hbm [shape: f32[8,128], index: 2, kind: output, shape index: {}]
  %s3 = sld [smem:[#allocation0]]
  $region18: #{tpu_custom_call.1} parent=0
    _
  %s5 = ssub.s32 1, %s3
  %s6 = scalar_select 0, %s5, %s3
  $region1: #{tpu_custom_call.1} parent=0
    #allocation2 [shape = 'u8[4096]{0}', space=vmem, size = 0x1000, scoped, tag = 'output window, operand 0, single buffered']
    #allocation3 [shape = 's32[1]{0}', space=sflag, size = 0x4, scoped, tag = 'scoped memory for tpu_custom_call.1']
    %7 = vsyncpa [#allocation3], 0
    // Predicated region
    $region2: #{tpu_custom_call.1} parent=1 // pred_check
      _
    $region3: #{tpu_custom_call.1} parent=1 // pred_check_branch
      %9 = sbr.rel (0) target = $region5
    $region4: #{tpu_custom_call.1} parent=1 // pred_region
      _
    $region5: #{tpu_custom_call.1} parent=1 // pred_fallthru
      _
    // Predicated region
    $region6: #{tpu_custom_call.1} parent=1 // pred_check
      _
    $region7: #{tpu_custom_call.1} parent=1 // pred_check_branch
      %11 = sbr.rel (0) target = $region9
    $region8: #{tpu_custom_call.1} parent=1 // pred_region
      _
    $region9: #{tpu_custom_call.1} parent=1 // pred_fallthru
      _
    %v12 = vld [vmem:[%s0] sm:$0xff]
    %v13 = vld [vmem:[%s1] sm:$0xff]
    %v14 = vlaneseq
    %v15 = vand.u32 %v14, 127
    %16 = vset.pattern.permute.xlu0 0
    %17 = vperm.xlu0 %16, %v13
    %v18 = vpop.permute.xlu0 %17
    %vm19 = vcmp.eq.s32.totalorder %v15, %v18
    %vm20 = vcmask 261120
    %v21 = vsel %vm20, %v12, -inf
    %22 = vmax.xlane.f32.xlu0 %v21
    %v23 = vpop.xlane.xlu0 %22
    %v24 = vsel %vm19, %v12, 0.0
    %v25 = vsel %vm20, %v24, 0.0
    %26 = vadd.xlane.f32.xlu0 %v25
    %v27 = vpop.xlane.xlu0 %26
    %v28 = vsub.f32 %v12, %v23
    %v29 = vmul.f32 %v28, 1.442695
    %v30 = vpow.pop %v29
    %v31 = vsel %vm20, %v30, 0.0
    %32 = vadd.xlane.f32.xlu0 %v31
    %v33 = vpop.xlane.xlu0 %32
    %v34 = vsel %vm19, %v30, 0.0
    %v35 = vsel %vm20, %v34, 0.0
    %36 = vadd.xlane.f32.xlu0 %v35
    %v37 = vpop.xlane.xlu0 %36
    %v38 = vsub.f32 %v27, %v23
    %v39 = vlog2.pop %v33
    %v40 = vmul.f32 %v39, 0.6931472
    %v41 = vsub.f32 %v38, %v40
    %vm42 = vcmp.gt.f32.partialorder %v37, %v33
    %v43 = vsel %vm42, 0.0, %v41
    %v44 = vmul.f32 %v33, 0.0
    %vm45 = vcmp.lt.f32.partialorder %v37, %v44
    %v46 = vsel %vm45, -100000.0, %v43
    %v47 = vsub.f32 0.0, %v46
    %v48 = vrot.slane %v47, 4
    %v49 = vadd.f32 %v47, %v48
    %v50 = vrot.slane %v49, 2
    %v51 = vadd.f32 %v49, %v50
    %v52 = vrot.slane %v51, 1
    %v53 = vadd.f32 %v51, %v52
    %54 = vst [vmem:[#allocation2] sm:$0xff] %v53
    // Predicated region
    $region10: #{tpu_custom_call.1} parent=1 // pred_check
      _
    $region11: #{tpu_custom_call.1} parent=1 // pred_check_branch
      %56 = sbr.rel (0) target = $region13
    $region12: #{tpu_custom_call.1} parent=1 // pred_region
      %s58 = ssub.s32 128, 128
      %59 = vsyncadd [#allocation3], %s58
      %s61 = sshll.u32 [#allocation2], 4
      %s62 = int_to_ptr.vmem [resolvable:$true] %s61
      %64 = dma.vmem_to_hbm [thread:$0]  %s62, 128, %s2, [#allocation3]
    $region13: #{tpu_custom_call.1} parent=1 // pred_fallthru
      _
    // Predicated region
    $region14: #{tpu_custom_call.1} parent=1 // pred_check
      _
    $region15: #{tpu_custom_call.1} parent=1 // pred_check_branch
      %66 = sbr.rel (0) target = $region17
    $region16: #{tpu_custom_call.1} parent=1 // pred_region
      %67 = dma.done [#allocation3], 128
    $region17: #{tpu_custom_call.1} parent=1 // pred_fallthru
      _
    %68 = vsyncpa [#allocation3], 1

</llo_original>
